<compile_context>
chip_gen: v7x
topology: tpu7x:2x2x1
jax: 0.10.0
libtpu: 0.0.40
codegen_flags: <defaults>
</compile_context>

<pallas_src>
import functools

import jax
import jax.numpy as jnp
from jax.experimental import pallas as pl
from jax.experimental.pallas import tpu as pltpu

K_POOL = 8          # AvgPool2d kernel_size=8, stride=1
BN_EPS = 1e-5
NB_MAX = 32         # images per grid step (cap keeps VMEM well under v5e/v7x limits)


def _counter_kernel(x_ref, w1_ref, b1_ref, w2_ref, b2_ref, o_ref, *, w_dim, nb):
    """One block of `nb` images per grid step.

    x_ref : (NB, C, HW)  input images (native dtype), channels on sublanes
    w1_ref: (C, C)  f32  conv1 weight, BN1 scale and 1/64 pool factor folded
    b1_ref: (C, 1)  f32  conv1 bias with BN1 folded
    w2_ref: (1, C)  f32  conv2 weight with BN2 folded
    b2_ref: (1, 1)  f32  SMEM scalar: conv2 bias with BN2 folded
    o_ref : (NB, 1, HW) f32  lane-dense output rows (valid at flat index h*W + w)
    """
    hw = x_ref.shape[-1]

    def per_image(b):
        x = x_ref[b].astype(jnp.float32)            # (C, HW), upcast on-chip
        # ---- AvgPool2d(8, stride=1): log-step window sums via lane rolls (XLU).
        # roll(x, hw-k)[r] = x[(r+k) % hw]; for valid output positions
        # r = h*W + w (h < OH, w < OW) every accessed index r + kw + kh*W is
        # <= HW-1, so no wrap contamination in the cropped region.
        s = x
        for sh in (1, 2, 4):                        # window-8 along W
            s = s + pltpu.roll(s, hw - sh, axis=1)
        for sh in (w_dim, 2 * w_dim, 4 * w_dim):    # window-8 along H
            s = s + pltpu.roll(s, hw - sh, axis=1)
        # TODO(synk): if a post-coarsening bundle dump ever shows the vext slot
        # saturating, replace the 3 H-direction rolls with a banded-matrix MXU
        # matmul; while mem-bound the rolls are free filler.

        # ---- conv1 (1x1) + BN1 + ReLU :  (C,C) @ (C,HW) on the MXU ----
        h = jnp.dot(w1_ref[...], s, preferred_element_type=jnp.float32) + b1_ref[...]
        h = jnp.maximum(h, 0.0)

        # ---- conv2 (1x1) + BN2 + ReLU :  (1,C) @ (C,HW) -> lane-dense (1,HW) ----
        o = jnp.dot(w2_ref[...], h, preferred_element_type=jnp.float32) + b2_ref[0, 0]
        o_ref[b] = jnp.maximum(o, 0.0).astype(o_ref.dtype)

    if nb <= 4:
        # Short static trip count: full unroll for LLO scheduler visibility.
        for b in range(nb):
            per_image(b)
    else:
        def body(b, carry):
            per_image(b)
            return carry
        jax.lax.fori_loop(0, nb, body, 0)


def counter_forward(x_nchw, params):
    (w1, b1, g1, be1, m1, v1, w2, b2, g2, be2, m2, v2) = params
    N, C, H, W = x_nchw.shape
    assert H >= K_POOL and W >= K_POOL, "AvgPool2d(8,1) needs H, W >= 8"
    assert K_POOL & (K_POOL - 1) == 0, "log-step rolls require power-of-two pool"
    OH, OW = H - K_POOL + 1, W - K_POOL + 1
    HW = H * W

    # --- choose the per-step image count NB ---
    # Amortize pipeline overhead over many images, but keep >=2 grid steps
    # when N >= 2 (v7x megacore) and cap the double-buffered input block
    # (2 * NB * 64 KiB) far under v5e's 16 MiB default scoped VMEM.
    steps = pl.cdiv(N, NB_MAX)
    if N >= 2:
        steps = max(steps, 2)
    NB = pl.cdiv(N, steps)
    Np = steps * NB

    # Native dtype in, metadata-only reshape (no wrapper astype pass over x).
    x = x_nchw.reshape(N, C, HW)
    if Np != N:
        x = jnp.pad(x, ((0, Np - N), (0, 0), (0, 0)))

    # Fold BatchNorm (inference mode), conv biases and the 1/(k*k) pool scale
    # into the conv weights (constants -> not the "pre-scale inputs" anti-pattern).
    s1 = g1 / jnp.sqrt(v1 + BN_EPS)
    t1 = be1 - m1 * s1
    s2 = g2 / jnp.sqrt(v2 + BN_EPS)
    t2 = be2 - m2 * s2
    w1_eff = ((w1 * s1[:, None]) * (1.0 / (K_POOL * K_POOL))).astype(jnp.float32)
    b1_eff = (b1 * s1 + t1).reshape(C, 1).astype(jnp.float32)
    w2_eff = (w2 * s2[:, None]).reshape(1, C).astype(jnp.float32)
    b2_eff = (b2 * s2 + t2).reshape(1, 1).astype(jnp.float32)

    kernel = functools.partial(_counter_kernel, w_dim=W, nb=NB)
    out = pl.pallas_call(
        kernel,
        out_shape=jax.ShapeDtypeStruct((Np, 1, HW), jnp.float32),
        grid_spec=pltpu.PrefetchScalarGridSpec(
            num_scalar_prefetch=0,
            grid=(steps,),
            in_specs=[
                pl.BlockSpec((NB, C, HW), lambda b: (b, 0, 0)),      # x
                # Constant blocks (index_map -> (0,0)) are revisit-skipped by
                # the pipeline: DMA'd once, not re-fetched every grid step.
                pl.BlockSpec((C, C), lambda b: (0, 0)),              # w1_eff
                pl.BlockSpec((C, 1), lambda b: (0, 0)),              # b1_eff
                pl.BlockSpec((1, C), lambda b: (0, 0)),              # w2_eff
                pl.BlockSpec(memory_space=pltpu.MemorySpace.SMEM),   # b2_eff scalar
            ],
            out_specs=pl.BlockSpec((NB, 1, HW), lambda b: (b, 0, 0)),
        ),
        compiler_params=pltpu.CompilerParams(
            dimension_semantics=("parallel",)),
    )(x, w1_eff, b1_eff, w2_eff, b2_eff)

    # Crop padded batch rows and the valid AvgPool region (flat index h*W + w).
    out = out[:N].reshape(N, 1, H, W)[:, :, :OH, :OW]    # NCHW: (N, 1, OH, OW)
    return out


def ref_forward(x_nchw, params):
    """Pure-JAX reference of the PyTorch forward (BN in inference mode)."""
    (w1, b1, g1, be1, m1, v1, w2, b2, g2, be2, m2, v2) = params
    x = x_nchw.astype(jnp.float32)
    N, C, H, W = x.shape
    OH, OW = H - K_POOL + 1, W - K_POOL + 1

    acc = jnp.zeros((N, C, OH, OW), jnp.float32)
    for kh in range(K_POOL):
        for kw in range(K_POOL):
            acc = acc + x[:, :, kh:kh + OH, kw:kw + OW]
    p = acc / (K_POOL * K_POOL)

    def bn(y, g, be, m, v):
        inv = g / jnp.sqrt(v + BN_EPS)
        return (y - m[None, :, None, None]) * inv[None, :, None, None] \
            + be[None, :, None, None]

    h = jnp.einsum("oc,nchw->nohw", w1, p) + b1[None, :, None, None]
    h = jnp.maximum(bn(h, g1, be1, m1, v1), 0.0)
    o = jnp.einsum("oc,nchw->nohw", w2, h) + b2[None, :, None, None]
    o = jnp.maximum(bn(o, g2, be2, m2, v2), 0.0)
    return o


def make_params(key):
    C = 64
    ks = jax.random.split(key, 8)
    # Conv weights in PyTorch (out, in) layout (1x1 kernel dims squeezed).
    w1 = jax.random.normal(ks[0], (C, C), jnp.float32) * 0.1
    b1 = jax.random.normal(ks[1], (C,), jnp.float32) * 0.1
    w2 = jax.random.normal(ks[2], (1, C), jnp.float32) * 0.1
    b2 = jax.random.normal(ks[3], (1,), jnp.float32) * 0.1
    # BatchNorm params / running stats (deterministic, non-trivial).
    g1 = 1.0 + 0.1 * jax.random.normal(ks[4], (C,), jnp.float32)
    be1 = 0.1 * jax.random.normal(ks[5], (C,), jnp.float32)
    m1 = 0.05 * jax.random.normal(ks[6], (C,), jnp.float32)
    v1 = 1.0 + 0.1 * jnp.abs(jax.random.normal(ks[7], (C,), jnp.float32))
    g2 = jnp.array([1.2], jnp.float32)
    be2 = jnp.array([0.05], jnp.float32)
    m2 = jnp.array([0.02], jnp.float32)
    v2 = jnp.array([0.9], jnp.float32)
    return (w1, b1, g1, be1, m1, v1, w2, b2, g2, be2, m2, v2)


if __name__ == "__main__":
    key = jax.random.PRNGKey(0)
    kx, kx2, kp = jax.random.split(key, 3)

    C, H, W = 64, 16, 16                   # C=64 is required by the module
    OH, OW = H - K_POOL + 1, W - K_POOL + 1
    params = make_params(kp)

    # Small batch (unrolled per-image path, grid of 2 steps).
    N = 2
    x = jax.random.normal(kx, (N, C, H, W), jnp.float32)
    out = jax.block_until_ready(counter_forward(x, params))
    ref = ref_forward(x, params)
    assert out.shape == (N, 1, OH, OW), out.shape
    err = float(jnp.max(jnp.abs(out - ref)))
    assert jnp.allclose(out, ref, atol=2e-4, rtol=2e-4), err

    # Larger batch exercising the coarsened grid (NB>4 fori_loop path + padding).
    N2 = 13
    x2 = jax.random.normal(kx2, (N2, C, H, W), jnp.float32)
    out2 = jax.block_until_ready(counter_forward(x2, params))
    ref2 = ref_forward(x2, params)
    assert out2.shape == (N2, 1, OH, OW), out2.shape
    err2 = float(jnp.max(jnp.abs(out2 - ref2)))
    assert jnp.allclose(out2, ref2, atol=2e-4, rtol=2e-4), err2

    print("KERNEL_OK")
</pallas_src>

<mosaic_0001>
module attributes {stable_mosaic.version = 11 : i64} {
  func.func @_counter_kernel(%arg0: i32, %arg1: memref<1x64x256xf32, #tpu.memory_space<vmem>>, %arg2: memref<64x64xf32, #tpu.memory_space<vmem>>, %arg3: memref<64x1xf32, #tpu.memory_space<vmem>>, %arg4: memref<1x64xf32, #tpu.memory_space<vmem>>, %arg5: memref<1x1xf32, #tpu.memory_space<smem>>, %arg6: memref<1x1x256xf32, #tpu.memory_space<vmem>>) attributes {dimension_semantics = [#tpu.dimension_semantics<parallel>], iteration_bounds = array<i64: 2>, scalar_prefetch = 0 : i64, scratch_operands = 0 : i64, tpu.core_type = #tpu.core_type<tc>, window_params = [{transform_indices = @transform_0, window_bounds = array<i64: 1, 64, 256>}, {pipeline_mode = #tpu.pipeline_mode<synchronous>, transform_indices = @transform_1, window_bounds = array<i64: 64, 64>}, {pipeline_mode = #tpu.pipeline_mode<synchronous>, transform_indices = @transform_2, window_bounds = array<i64: 64, 1>}, {pipeline_mode = #tpu.pipeline_mode<synchronous>, transform_indices = @transform_3, window_bounds = array<i64: 1, 64>}, {transform_indices = @transform_4, window_bounds = array<i64: 1, 1>}, {transform_indices = @transform_5, window_bounds = array<i64: 1, 1, 256>}]} {
    %c0 = arith.constant 0 : index
    %c0_0 = arith.constant 0 : index
    %c0_1 = arith.constant 0 : index
    %0 = vector.load %arg1[%c0, %c0_0, %c0_1] : memref<1x64x256xf32, #tpu.memory_space<vmem>>, vector<1x64x256xf32>
    %1 = vector.shape_cast %0 : vector<1x64x256xf32> to vector<64x256xf32>
    %c255_i32 = arith.constant 255 : i32
    %2 = tpu.dynamic_rotate %1 by %c255_i32 dim 1 : vector<64x256xf32>, i32 -> vector<64x256xf32>
    %3 = arith.addf %1, %2 : vector<64x256xf32>
    %c254_i32 = arith.constant 254 : i32
    %4 = tpu.dynamic_rotate %3 by %c254_i32 dim 1 : vector<64x256xf32>, i32 -> vector<64x256xf32>
    %5 = arith.addf %3, %4 : vector<64x256xf32>
    %c252_i32 = arith.constant 252 : i32
    %6 = tpu.dynamic_rotate %5 by %c252_i32 dim 1 : vector<64x256xf32>, i32 -> vector<64x256xf32>
    %7 = arith.addf %5, %6 : vector<64x256xf32>
    %c240_i32 = arith.constant 240 : i32
    %8 = tpu.dynamic_rotate %7 by %c240_i32 dim 1 : vector<64x256xf32>, i32 -> vector<64x256xf32>
    %9 = arith.addf %7, %8 : vector<64x256xf32>
    %c224_i32 = arith.constant 224 : i32
    %10 = tpu.dynamic_rotate %9 by %c224_i32 dim 1 : vector<64x256xf32>, i32 -> vector<64x256xf32>
    %11 = arith.addf %9, %10 : vector<64x256xf32>
    %c192_i32 = arith.constant 192 : i32
    %12 = tpu.dynamic_rotate %11 by %c192_i32 dim 1 : vector<64x256xf32>, i32 -> vector<64x256xf32>
    %13 = arith.addf %11, %12 : vector<64x256xf32>
    %c0_2 = arith.constant 0 : index
    %c0_3 = arith.constant 0 : index
    %14 = vector.load %arg2[%c0_2, %c0_3] : memref<64x64xf32, #tpu.memory_space<vmem>>, vector<64x64xf32>
    %cst = arith.constant dense<0.000000e+00> : vector<64x256xf32>
    %15 = tpu.matmul %14, %13, %cst {dimension_numbers = #tpu.dot_dimension_numbers<[1], [0], [0], [1], [0, 0, 1, 1], [], []>} : vector<64x64xf32>, vector<64x256xf32>, vector<64x256xf32> -> vector<64x256xf32>
    %c0_4 = arith.constant 0 : index
    %c0_5 = arith.constant 0 : index
    %16 = vector.load %arg3[%c0_4, %c0_5] : memref<64x1xf32, #tpu.memory_space<vmem>>, vector<64x1xf32>
    %17 = vector.broadcast %16 : vector<64x1xf32> to vector<64x256xf32>
    %18 = arith.addf %15, %17 : vector<64x256xf32>
    %cst_6 = arith.constant 0.000000e+00 : f32
    %19 = vector.broadcast %cst_6 : f32 to vector<64x256xf32>
    %20 = arith.maximumf %18, %19 : vector<64x256xf32>
    %c0_7 = arith.constant 0 : index
    %c0_8 = arith.constant 0 : index
    %21 = vector.load %arg4[%c0_7, %c0_8] : memref<1x64xf32, #tpu.memory_space<vmem>>, vector<1x64xf32>
    %cst_9 = arith.constant dense<0.000000e+00> : vector<1x256xf32>
    %22 = tpu.matmul %21, %20, %cst_9 {dimension_numbers = #tpu.dot_dimension_numbers<[1], [0], [0], [1], [0, 0, 1, 1], [], []>} : vector<1x64xf32>, vector<64x256xf32>, vector<1x256xf32> -> vector<1x256xf32>
    %c0_10 = arith.constant 0 : index
    %c0_11 = arith.constant 0 : index
    %23 = memref.load %arg5[%c0_10, %c0_11] : memref<1x1xf32, #tpu.memory_space<smem>>
    %24 = vector.broadcast %23 : f32 to vector<1x256xf32>
    %25 = arith.addf %22, %24 : vector<1x256xf32>
    %cst_12 = arith.constant 0.000000e+00 : f32
    %26 = vector.broadcast %cst_12 : f32 to vector<1x256xf32>
    %27 = arith.maximumf %25, %26 : vector<1x256xf32>
    %c0_13 = arith.constant 0 : index
    %c0_14 = arith.constant 0 : index
    %c0_15 = arith.constant 0 : index
    %28 = vector.load %arg6[%c0_13, %c0_14, %c0_15] : memref<1x1x256xf32, #tpu.memory_space<vmem>>, vector<1x1x256xf32>
    %29 = vector.shape_cast %28 : vector<1x1x256xf32> to vector<1x256xf32>
    %30 = vector.shape_cast %27 : vector<1x256xf32> to vector<1x1x256xf32>
    tpu.vector_store %arg6[%c0_13, %c0_14, %c0_15], %30 {strides = array<i32>} : memref<1x1x256xf32, #tpu.memory_space<vmem>>, vector<1x1x256xf32>,
    return
  }
  func.func @transform_0(%arg0: i32) -> (i32, i32, i32) {
    %c0_i32 = arith.constant 0 : i32
    %c0_i32_0 = arith.constant 0 : i32
    %c0_i32_1 = arith.constant 0 : i32
    return %arg0, %c0_i32, %c0_i32_0 : i32, i32, i32
  }
  func.func @transform_1(%arg0: i32) -> (i32, i32) {
    %c0_i32 = arith.constant 0 : i32
    %c0_i32_0 = arith.constant 0 : i32
    %c0_i32_1 = arith.constant 0 : i32
    return %c0_i32, %c0_i32_0 : i32, i32
  }
  func.func @transform_2(%arg0: i32) -> (i32, i32) {
    %c0_i32 = arith.constant 0 : i32
    %c0_i32_0 = arith.constant 0 : i32
    %c0_i32_1 = arith.constant 0 : i32
    return %c0_i32, %c0_i32_0 : i32, i32
  }
  func.func @transform_3(%arg0: i32) -> (i32, i32) {
    %c0_i32 = arith.constant 0 : i32
    %c0_i32_0 = arith.constant 0 : i32
    %c0_i32_1 = arith.constant 0 : i32
    return %c0_i32, %c0_i32_0 : i32, i32
  }
  func.func @transform_4(%arg0: i32) -> (i32, i32) {
    %c0_i32 = arith.constant 0 : i32
    %c0_i32_0 = arith.constant 0 : i32
    %c0_i32_1 = arith.constant 0 : i32
    return %c0_i32, %c0_i32_0 : i32, i32
  }
  func.func @transform_5(%arg0: i32) -> (i32, i32, i32) {
    %c0_i32 = arith.constant 0 : i32
    %c0_i32_0 = arith.constant 0 : i32
    %c0_i32_1 = arith.constant 0 : i32
    return %arg0, %c0_i32, %c0_i32_0 : i32, i32, i32
  }
}

</mosaic_0001>

<llo_original>
// kernel: tpu_custom_call.1
$region0: #{tpu_custom_call.1}
  #allocation0 [shape = 'u32[]', space=smem, size = 0x4, offset = 0x4, fixed_abs, tag = 'smem constant byte address 0x4 - core index']
  #allocation1 [shape = 'u32[144,128]{1,0:T(1,128)}', space=vmem, size = 0x12000, scoped, tag = 'internal scratch']
  #allocation2 [shape = 'f32[1,1]{1,0:T(1,128)S(6)}', space=smem, size = 0x200, scoped, tag = 'scoped memory for tpu_custom_call.1']
  %s0 = inlined_call_operand.hbm [shape: f32[2,64,256], index: 0, kind: input, shape index: {}]
  %s1 = inlined_call_operand.vmem [shape: f32[64,64], index: 1, kind: input, shape index: {}]
  %s2 = inlined_call_operand.vmem [shape: f32[64,1], index: 2, kind: input, shape index: {}]
  %s3 = inlined_call_operand.vmem [shape: f32[1,64], index: 3, kind: input, shape index: {}]
  %s4 = inlined_call_operand.<no memory space> [shape: f32[1,1], index: 4, kind: input, shape index: {}]
  %s5 = inlined_call_operand.hbm [shape: f32[2,1,256], index: 5, kind: output, shape index: {}]
  %s6 = sld [smem:[#allocation0]]
  $region57: #{tpu_custom_call.1} parent=0
    _
  %s8 = ssub.s32 1, %s6
  %s9 = scalar_select 0, %s8, %s6
  %10 = sst [smem:[#allocation2]] %s4
  $region1: #{tpu_custom_call.1} parent=0
    #allocation3 [shape = 'u8[131072]{0}', space=vmem, size = 0x20000, scoped, tag = 'input window, operand 0']
    #allocation4 [shape = 's32[2]{0}', space=sflag, size = 0x8, scoped, tag = 'scoped memory for tpu_custom_call.1']
    #allocation5 [shape = 's32[2]{0}', space=sflag, size = 0x8, scoped, tag = 'scoped memory for tpu_custom_call.1']
    #allocation6 [shape = 'u8[2048]{0}', space=vmem, size = 0x800, scoped, tag = 'output window, operand 0']
    %11 = vsyncpa [#allocation4], 0
    %s12 = scalar_lea.sflag [#allocation4], 1
    %13 = vsyncpa %s12, 0
    %14 = vsyncpa [#allocation5], 0
    %s15 = scalar_lea.sflag [#allocation5], 1
    %16 = vsyncpa %s15, 0
    loop: start=0, step=1, limit=4
    $region2: #{tpu_custom_call.1} parent=1 // loop_pre_header
      _
    $region3: #{tpu_custom_call.1} parent=1 // loop_header
      %s18 = sphi 0, %s22
      %p19 = scmp.ge.s32.totalorder %s18, 4
      %s28 = sphi 0, %s30
      %s31 = sphi 0, %s28
      %s32 = sphi 0, %s31
      %s48 = sphi 0, %s32
      %s52 = sphi 0, %s52
      %s54 = sphi 0, %s52
      %s55 = sphi 0, %s54
      %s69 = sphi 0, %s55
      %s73 = sphi 0, %s73
      %s75 = sphi 0, %s73
      %s76 = sphi 0, %s75
      %s90 = sphi 0, %s76
      %s94 = sphi 0, %s94
      %s96 = sphi 0, %s94
      %s97 = sphi 0, %s96
      %s111 = sphi 0, %s97
      %s115 = sphi 0, %s115
      %s117 = sphi 0, %s115
      %s118 = sphi 0, %s117
      %s132 = sphi 0, %s118
      %s138 = sphi 0, %s140
      %s141 = sphi 0, %s138
      %s142 = sphi 0, %s141
      %s158 = sphi 0, %s142
    $region4: #{tpu_custom_call.1} parent=1 // loop_header_branch
      %21 = sbr.rel (%p19) target = $region8
    $region5: #{tpu_custom_call.1} parent=1 // loop_body
      %s23 = ssub.s32 %s18, 1
      %s24 = ssub.s32 %s18, 2
      %s25 = sadd.s32 %s18, 1
      %s26 = ssub.s32 %s18, %s25
      %p27 = scmp.eq.s32.totalorder %s26, 0
      %s29 = sadd.s32 %s28, 1
      %s30 = scalar_select %p27, %s28, %s29
      %p33 = pneg %p27
      %p34 = scmp.eq.s32.totalorder %s18, 1
      %p35 = por %p33, %p34
      %p36 = scmp.ne.s32.totalorder %s28, %s31
      %p37 = scmp.eq.s32.totalorder %s18, 0
      %p38 = por %p36, %p37
      %p39 = scmp.ne.s32.totalorder %s28, %s31
      %p40 = scmp.eq.s32.totalorder %s23, 1
      %p41 = por %p39, %p40
      %p42 = scmp.ne.s32.totalorder %s31, %s32
      %p43 = scmp.eq.s32.totalorder %s23, 0
      %p44 = por %p42, %p43
      %p45 = scmp.ne.s32.totalorder %s31, %s32
      %p46 = scmp.eq.s32.totalorder %s24, 1
      %p47 = por %p45, %p46
      %p49 = scmp.ne.s32.totalorder %s32, %s48
      %p50 = scmp.eq.s32.totalorder %s24, 0
      %p51 = por %p49, %p50
      %s53 = sadd.s32 %s52, 1
      %p56 = scmp.eq.s32.totalorder %s18, 1
      %p57 = scmp.ne.s32.totalorder %s52, %s54
      %p58 = scmp.eq.s32.totalorder %s18, 0
      %p59 = por %p57, %p58
      %p60 = scmp.ne.s32.totalorder %s52, %s54
      %p61 = scmp.eq.s32.totalorder %s23, 1
      %p62 = por %p60, %p61
      %p63 = scmp.ne.s32.totalorder %s54, %s55
      %p64 = scmp.eq.s32.totalorder %s23, 0
      %p65 = por %p63, %p64
      %p66 = scmp.ne.s32.totalorder %s54, %s55
      %p67 = scmp.eq.s32.totalorder %s24, 1
      %p68 = por %p66, %p67
      %p70 = scmp.ne.s32.totalorder %s55, %s69
      %p71 = scmp.eq.s32.totalorder %s24, 0
      %p72 = por %p70, %p71
      %s74 = sadd.s32 %s73, 1
      %p77 = scmp.eq.s32.totalorder %s18, 1
      %p78 = scmp.ne.s32.totalorder %s73, %s75
      %p79 = scmp.eq.s32.totalorder %s18, 0
      %p80 = por %p78, %p79
      %p81 = scmp.ne.s32.totalorder %s73, %s75
      %p82 = scmp.eq.s32.totalorder %s23, 1
      %p83 = por %p81, %p82
      %p84 = scmp.ne.s32.totalorder %s75, %s76
      %p85 = scmp.eq.s32.totalorder %s23, 0
      %p86 = por %p84, %p85
      %p87 = scmp.ne.s32.totalorder %s75, %s76
      %p88 = scmp.eq.s32.totalorder %s24, 1
      %p89 = por %p87, %p88
      %p91 = scmp.ne.s32.totalorder %s76, %s90
      %p92 = scmp.eq.s32.totalorder %s24, 0
      %p93 = por %p91, %p92
      %s95 = sadd.s32 %s94, 1
      %p98 = scmp.eq.s32.totalorder %s18, 1
      %p99 = scmp.ne.s32.totalorder %s94, %s96
      %p100 = scmp.eq.s32.totalorder %s18, 0
      %p101 = por %p99, %p100
      %p102 = scmp.ne.s32.totalorder %s94, %s96
      %p103 = scmp.eq.s32.totalorder %s23, 1
      %p104 = por %p102, %p103
      %p105 = scmp.ne.s32.totalorder %s96, %s97
      %p106 = scmp.eq.s32.totalorder %s23, 0
      %p107 = por %p105, %p106
      %p108 = scmp.ne.s32.totalorder %s96, %s97
      %p109 = scmp.eq.s32.totalorder %s24, 1
      %p110 = por %p108, %p109
      %p112 = scmp.ne.s32.totalorder %s97, %s111
      %p113 = scmp.eq.s32.totalorder %s24, 0
      %p114 = por %p112, %p113
      %s116 = sadd.s32 %s115, 1
      %p119 = scmp.eq.s32.totalorder %s18, 1
      %p120 = scmp.ne.s32.totalorder %s115, %s117
      %p121 = scmp.eq.s32.totalorder %s18, 0
      %p122 = por %p120, %p121
      %p123 = scmp.ne.s32.totalorder %s115, %s117
      %p124 = scmp.eq.s32.totalorder %s23, 1
      %p125 = por %p123, %p124
      %p126 = scmp.ne.s32.totalorder %s117, %s118
      %p127 = scmp.eq.s32.totalorder %s23, 0
      %p128 = por %p126, %p127
      %p129 = scmp.ne.s32.totalorder %s117, %s118
      %p130 = scmp.eq.s32.totalorder %s24, 1
      %p131 = por %p129, %p130
      %p133 = scmp.ne.s32.totalorder %s118, %s132
      %p134 = scmp.eq.s32.totalorder %s24, 0
      %p135 = por %p133, %p134
      %s136 = ssub.s32 %s18, %s25
      %p137 = scmp.eq.s32.totalorder %s136, 0
      %s139 = sadd.s32 %s138, 1
      %s140 = scalar_select %p137, %s138, %s139
      %p143 = pneg %p137
      %p144 = scmp.eq.s32.totalorder %s18, 1
      %p145 = por %p143, %p144
      %p146 = scmp.ne.s32.totalorder %s138, %s141
      %p147 = scmp.eq.s32.totalorder %s18, 0
      %p148 = por %p146, %p147
      %p149 = scmp.ne.s32.totalorder %s138, %s141
      %p150 = scmp.eq.s32.totalorder %s23, 1
      %p151 = por %p149, %p150
      %p152 = scmp.ne.s32.totalorder %s141, %s142
      %p153 = scmp.eq.s32.totalorder %s23, 0
      %p154 = por %p152, %p153
      %p155 = scmp.ne.s32.totalorder %s141, %s142
      %p156 = scmp.eq.s32.totalorder %s24, 1
      %p157 = por %p155, %p156
      %p159 = scmp.ne.s32.totalorder %s142, %s158
      %p160 = scmp.eq.s32.totalorder %s24, 0
      %p161 = por %p159, %p160
      %p162 = scmp.le.s32.totalorder 1, %s18
      %p163 = scmp.lt.s32.totalorder %s18, 3
      %p164 = pnand %p162, %p163
      %p165 = pneg %p164
      // Predicated region
      $region9: #{tpu_custom_call.1} parent=5 // pred_check
        _
      $region10: #{tpu_custom_call.1} parent=5 // pred_check_branch
        %167 = sbr.rel (%p164) target = $region12
      $region11: #{tpu_custom_call.1} parent=5 // pred_region
        %s168 = ssub.s32 %s18, 1
        // Predicated region
        $region13: #{tpu_custom_call.1} parent=11 // pred_check
          %p169 = pneg %p65
        $region14: #{tpu_custom_call.1} parent=11 // pred_check_branch
          %171 = sbr.rel (%p169) target = $region16
        $region15: #{tpu_custom_call.1} parent=11 // pred_region
          _
        $region16: #{tpu_custom_call.1} parent=11 // pred_fallthru
          _
        // Predicated region
        $region17: #{tpu_custom_call.1} parent=11 // pred_check
          %p172 = pneg %p86
        $region18: #{tpu_custom_call.1} parent=11 // pred_check_branch
          %174 = sbr.rel (%p172) target = $region20
        $region19: #{tpu_custom_call.1} parent=11 // pred_region
          _
        $region20: #{tpu_custom_call.1} parent=11 // pred_fallthru
          _
        // Predicated region
        $region21: #{tpu_custom_call.1} parent=11 // pred_check
          %p175 = pneg %p107
        $region22: #{tpu_custom_call.1} parent=11 // pred_check_branch
          %177 = sbr.rel (%p175) target = $region24
        $region23: #{tpu_custom_call.1} parent=11 // pred_region
          _
        $region24: #{tpu_custom_call.1} parent=11 // pred_fallthru
          _
        // Predicated region
        $region25: #{tpu_custom_call.1} parent=11 // pred_check
          %p178 = pneg %p128
        $region26: #{tpu_custom_call.1} parent=11 // pred_check_branch
          %180 = sbr.rel (%p178) target = $region28
        $region27: #{tpu_custom_call.1} parent=11 // pred_region
          _
        $region28: #{tpu_custom_call.1} parent=11 // pred_fallthru
          _
      $region12: #{tpu_custom_call.1} parent=5 // pred_fallthru
        _
      %p181 = scmp.lt.s32.totalorder %s18, 2
      // Predicated region
      $region29: #{tpu_custom_call.1} parent=5 // pred_check
        %p182 = pneg %p181
      $region30: #{tpu_custom_call.1} parent=5 // pred_check_branch
        %184 = sbr.rel (%p182) target = $region32
      $region31: #{tpu_custom_call.1} parent=5 // pred_region
        // Predicated region
        $region33: #{tpu_custom_call.1} parent=31 // pred_check
          %p185 = pneg %p38
        $region34: #{tpu_custom_call.1} parent=31 // pred_check_branch
          %187 = sbr.rel (%p185) target = $region36
        $region35: #{tpu_custom_call.1} parent=31 // pred_region
          %s188 = sand.u32 %s28, 1
          %s189 = scalar_lea.sflag [#allocation4], %s188
          %s190 = sand.u32 %s28, 1
          %s191 = smul.addr %s190, 128
          %s192 = scalar_lea.vmem [#allocation3], %s191
          %s194 = ssub.s32 2048, 2048
          %195 = vsyncadd %s189, %s194
          %s196 = smul.addr %s18, 16
          %s197 = smul.addr %s196, 128
          %s198 = scalar_lea.hbm %s0, %s197
          %s199 = sshll.u32 %s192, 4
          %s200 = int_to_ptr.vmem [resolvable:$true] %s199
          %205 = dma.hbm_to_vmem [thread:$0]  %s198, 2048, %s200, %s189, 256, 256, 16
        $region36: #{tpu_custom_call.1} parent=31 // pred_fallthru
          _
      $region32: #{tpu_custom_call.1} parent=5 // pred_fallthru
        _
      %p206 = scmp.le.s32.totalorder 1, %s18
      %p207 = scmp.lt.s32.totalorder %s18, 3
      %p208 = pnand %p206, %p207
      %p209 = pneg %p208
      // Predicated region
      $region37: #{tpu_custom_call.1} parent=5 // pred_check
        _
      $region38: #{tpu_custom_call.1} parent=5 // pred_check_branch
        %211 = sbr.rel (%p208) target = $region40
      $region39: #{tpu_custom_call.1} parent=5 // pred_region
        %s212 = ssub.s32 %s18, 1
        %s213 = sand.u32 %s31, 1
        %s214 = scalar_lea.sflag [#allocation4], %s213
        %s215 = sand.u32 %s31, 1
        %s216 = smul.addr %s215, 128
        %s217 = scalar_lea.vmem [#allocation3], %s216
        // Predicated region
        $region41: #{tpu_custom_call.1} parent=39 // pred_check
          %p218 = pneg %p44
        $region42: #{tpu_custom_call.1} parent=39 // pred_check_branch
          %220 = sbr.rel (%p218) target = $region44
        $region43: #{tpu_custom_call.1} parent=39 // pred_region
          %221 = dma.done %s214, 2048
        $region44: #{tpu_custom_call.1} parent=39 // pred_fallthru
          _
        %s222 = sand.u32 %s31, 1
        %s223 = scalar_lea.sflag [#allocation4], %s222
        %s224 = sand.u32 %s31, 1
        %s225 = smul.addr %s224, 128
        %s226 = scalar_lea.vmem [#allocation3], %s225
        %p227 = pneg %p44
        %p228 = pneg %p41
        %p229 = pneg %p65
        %p230 = pneg %p62
        %p231 = pneg %p86
        %p232 = pneg %p83
        %p233 = pneg %p107
        %p234 = pneg %p104
        %p235 = pneg %p128
        %p236 = pneg %p125
        %p237 = pneg %p154
        %p238 = pneg %p151
        %s239 = sand.u32 %s141, 1
        %s240 = scalar_lea.sflag [#allocation5], %s239
        %s241 = sand.u32 %s141, 1
        %s242 = smul.addr %s241, 2
        %s243 = scalar_lea.vmem [#allocation6], %s242
        %v244 = vld [vmem:[%s217] sm:$0xff]
        %v245 = vld [vmem:[%s217 + $0x8] sm:$0xff]
        %v246 = vld [vmem:[%s217 + $0x10] sm:$0xff]
        %v247 = vld [vmem:[%s217 + $0x18] sm:$0xff]
        %v248 = vld [vmem:[%s217 + $0x20] sm:$0xff]
        %v249 = vld [vmem:[%s217 + $0x28] sm:$0xff]
        %v250 = vld [vmem:[%s217 + $0x30] sm:$0xff]
        %v251 = vld [vmem:[%s217 + $0x38] sm:$0xff]
        %v252 = vld [vmem:[%s217 + $0x40] sm:$0xff]
        %v253 = vld [vmem:[%s217 + $0x48] sm:$0xff]
        %v254 = vld [vmem:[%s217 + $0x50] sm:$0xff]
        %v255 = vld [vmem:[%s217 + $0x58] sm:$0xff]
        %v256 = vld [vmem:[%s217 + $0x60] sm:$0xff]
        %v257 = vld [vmem:[%s217 + $0x68] sm:$0xff]
        %v258 = vld [vmem:[%s217 + $0x70] sm:$0xff]
        %v259 = vld [vmem:[%s217 + $0x78] sm:$0xff]
        %260 = vrot.lane.b32.xlu0 %v244, 127
        %v261 = vpop.permute.xlu0 %260
        %262 = vrot.lane.b32.xlu0 %v246, 127
        %v263 = vpop.permute.xlu0 %262
        %264 = vrot.lane.b32.xlu0 %v248, 127
        %v265 = vpop.permute.xlu0 %264
        %266 = vrot.lane.b32.xlu0 %v250, 127
        %v267 = vpop.permute.xlu0 %266
        %268 = vrot.lane.b32.xlu0 %v252, 127
        %v269 = vpop.permute.xlu0 %268
        %270 = vrot.lane.b32.xlu0 %v254, 127
        %v271 = vpop.permute.xlu0 %270
        %272 = vrot.lane.b32.xlu0 %v256, 127
        %v273 = vpop.permute.xlu0 %272
        %274 = vrot.lane.b32.xlu0 %v258, 127
        %v275 = vpop.permute.xlu0 %274
        %276 = vrot.lane.b32.xlu0 %v245, 127
        %v277 = vpop.permute.xlu0 %276
        %278 = vrot.lane.b32.xlu0 %v247, 127
        %v279 = vpop.permute.xlu0 %278
        %280 = vrot.lane.b32.xlu0 %v249, 127
        %v281 = vpop.permute.xlu0 %280
        %282 = vrot.lane.b32.xlu0 %v251, 127
        %v283 = vpop.permute.xlu0 %282
        %284 = vrot.lane.b32.xlu0 %v253, 127
        %v285 = vpop.permute.xlu0 %284
        %286 = vrot.lane.b32.xlu0 %v255, 127
        %v287 = vpop.permute.xlu0 %286
        %288 = vrot.lane.b32.xlu0 %v257, 127
        %v289 = vpop.permute.xlu0 %288
        %290 = vrot.lane.b32.xlu0 %v259, 127
        %v291 = vpop.permute.xlu0 %290
        %v292 = vlaneseq
        %v293 = vand.u32 %v292, 127
        %vm294 = vcmp.lt.s32.totalorder %v293, 127
        %v295 = vsel %vm294, %v261, %v277
        %v296 = vsel %vm294, %v263, %v279
        %v297 = vsel %vm294, %v265, %v281
        %v298 = vsel %vm294, %v267, %v283
        %v299 = vsel %vm294, %v269, %v285
        %v300 = vsel %vm294, %v271, %v287
        %v301 = vsel %vm294, %v273, %v289
        %v302 = vsel %vm294, %v275, %v291
        %v303 = vsel %vm294, %v277, %v261
        %v304 = vsel %vm294, %v279, %v263
        %v305 = vsel %vm294, %v281, %v265
        %v306 = vsel %vm294, %v283, %v267
        %v307 = vsel %vm294, %v285, %v269
        %v308 = vsel %vm294, %v287, %v271
        %v309 = vsel %vm294, %v289, %v273
        %v310 = vsel %vm294, %v291, %v275
        %v311 = vadd.f32 %v244, %v295
        %v312 = vadd.f32 %v245, %v303
        %v313 = vadd.f32 %v246, %v296
        %v314 = vadd.f32 %v247, %v304
        %v315 = vadd.f32 %v248, %v297
        %v316 = vadd.f32 %v249, %v305
        %v317 = vadd.f32 %v250, %v298
        %v318 = vadd.f32 %v251, %v306
        %v319 = vadd.f32 %v252, %v299
        %v320 = vadd.f32 %v253, %v307
        %v321 = vadd.f32 %v254, %v300
        %v322 = vadd.f32 %v255, %v308
        %v323 = vadd.f32 %v256, %v301
        %v324 = vadd.f32 %v257, %v309
        %v325 = vadd.f32 %v258, %v302
        %v326 = vadd.f32 %v259, %v310
        %327 = vrot.lane.b32.xlu0 %v311, 126
        %v328 = vpop.permute.xlu0 %327
        %329 = vrot.lane.b32.xlu0 %v313, 126
        %v330 = vpop.permute.xlu0 %329
        %331 = vrot.lane.b32.xlu0 %v315, 126
        %v332 = vpop.permute.xlu0 %331
        %333 = vrot.lane.b32.xlu0 %v317, 126
        %v334 = vpop.permute.xlu0 %333
        %335 = vrot.lane.b32.xlu0 %v319, 126
        %v336 = vpop.permute.xlu0 %335
        %337 = vrot.lane.b32.xlu0 %v321, 126
        %v338 = vpop.permute.xlu0 %337
        %339 = vrot.lane.b32.xlu0 %v323, 126
        %v340 = vpop.permute.xlu0 %339
        %341 = vrot.lane.b32.xlu0 %v325, 126
        %v342 = vpop.permute.xlu0 %341
        %343 = vrot.lane.b32.xlu0 %v312, 126
        %v344 = vpop.permute.xlu0 %343
        %345 = vrot.lane.b32.xlu0 %v314, 126
        %v346 = vpop.permute.xlu0 %345
        %347 = vrot.lane.b32.xlu0 %v316, 126
        %v348 = vpop.permute.xlu0 %347
        %349 = vrot.lane.b32.xlu0 %v318, 126
        %v350 = vpop.permute.xlu0 %349
        %351 = vrot.lane.b32.xlu0 %v320, 126
        %v352 = vpop.permute.xlu0 %351
        %353 = vrot.lane.b32.xlu0 %v322, 126
        %v354 = vpop.permute.xlu0 %353
        %355 = vrot.lane.b32.xlu0 %v324, 126
        %v356 = vpop.permute.xlu0 %355
        %357 = vrot.lane.b32.xlu0 %v326, 126
        %v358 = vpop.permute.xlu0 %357
        %vm359 = vcmp.lt.s32.totalorder %v293, 126
        %v360 = vsel %vm359, %v328, %v344
        %v361 = vsel %vm359, %v330, %v346
        %v362 = vsel %vm359, %v332, %v348
        %v363 = vsel %vm359, %v334, %v350
        %v364 = vsel %vm359, %v336, %v352
        %v365 = vsel %vm359, %v338, %v354
        %v366 = vsel %vm359, %v340, %v356
        %v367 = vsel %vm359, %v342, %v358
        %v368 = vsel %vm359, %v344, %v328
        %v369 = vsel %vm359, %v346, %v330
        %v370 = vsel %vm359, %v348, %v332
        %v371 = vsel %vm359, %v350, %v334
        %v372 = vsel %vm359, %v352, %v336
        %v373 = vsel %vm359, %v354, %v338
        %v374 = vsel %vm359, %v356, %v340
        %v375 = vsel %vm359, %v358, %v342
        %v376 = vadd.f32 %v311, %v360
        %v377 = vadd.f32 %v312, %v368
        %v378 = vadd.f32 %v313, %v361
        %v379 = vadd.f32 %v314, %v369
        %v380 = vadd.f32 %v315, %v362
        %v381 = vadd.f32 %v316, %v370
        %v382 = vadd.f32 %v317, %v363
        %v383 = vadd.f32 %v318, %v371
        %v384 = vadd.f32 %v319, %v364
        %v385 = vadd.f32 %v320, %v372
        %v386 = vadd.f32 %v321, %v365
        %v387 = vadd.f32 %v322, %v373
        %v388 = vadd.f32 %v323, %v366
        %v389 = vadd.f32 %v324, %v374
        %v390 = vadd.f32 %v325, %v367
        %v391 = vadd.f32 %v326, %v375
        %392 = vrot.lane.b32.xlu0 %v376, 124
        %v393 = vpop.permute.xlu0 %392
        %394 = vrot.lane.b32.xlu0 %v378, 124
        %v395 = vpop.permute.xlu0 %394
        %396 = vrot.lane.b32.xlu0 %v380, 124
        %v397 = vpop.permute.xlu0 %396
        %398 = vrot.lane.b32.xlu0 %v382, 124
        %v399 = vpop.permute.xlu0 %398
        %400 = vrot.lane.b32.xlu0 %v384, 124
        %v401 = vpop.permute.xlu0 %400
        %402 = vrot.lane.b32.xlu0 %v386, 124
        %v403 = vpop.permute.xlu0 %402
        %404 = vrot.lane.b32.xlu0 %v388, 124
        %v405 = vpop.permute.xlu0 %404
        %406 = vrot.lane.b32.xlu0 %v390, 124
        %v407 = vpop.permute.xlu0 %406
        %408 = vrot.lane.b32.xlu0 %v377, 124
        %v409 = vpop.permute.xlu0 %408
        %410 = vrot.lane.b32.xlu0 %v379, 124
        %v411 = vpop.permute.xlu0 %410
        %412 = vrot.lane.b32.xlu0 %v381, 124
        %v413 = vpop.permute.xlu0 %412
        %414 = vrot.lane.b32.xlu0 %v383, 124
        %v415 = vpop.permute.xlu0 %414
        %416 = vrot.lane.b32.xlu0 %v385, 124
        %v417 = vpop.permute.xlu0 %416
        %418 = vrot.lane.b32.xlu0 %v387, 124
        %v419 = vpop.permute.xlu0 %418
        %420 = vrot.lane.b32.xlu0 %v389, 124
        %v421 = vpop.permute.xlu0 %420
        %422 = vrot.lane.b32.xlu0 %v391, 124
        %v423 = vpop.permute.xlu0 %422
        %vm424 = vcmp.lt.s32.totalorder %v293, 124
        %v425 = vsel %vm424, %v393, %v409
        %v426 = vsel %vm424, %v395, %v411
        %v427 = vsel %vm424, %v397, %v413
        %v428 = vsel %vm424, %v399, %v415
        %v429 = vsel %vm424, %v401, %v417
        %v430 = vsel %vm424, %v403, %v419
        %v431 = vsel %vm424, %v405, %v421
        %v432 = vsel %vm424, %v407, %v423
        %v433 = vsel %vm424, %v409, %v393
        %v434 = vsel %vm424, %v411, %v395
        %v435 = vsel %vm424, %v413, %v397
        %v436 = vsel %vm424, %v415, %v399
        %v437 = vsel %vm424, %v417, %v401
        %v438 = vsel %vm424, %v419, %v403
        %v439 = vsel %vm424, %v421, %v405
        %v440 = vsel %vm424, %v423, %v407
        %v441 = vadd.f32 %v376, %v425
        %v442 = vadd.f32 %v377, %v433
        %v443 = vadd.f32 %v378, %v426
        %v444 = vadd.f32 %v379, %v434
        %v445 = vadd.f32 %v380, %v427
        %v446 = vadd.f32 %v381, %v435
        %v447 = vadd.f32 %v382, %v428
        %v448 = vadd.f32 %v383, %v436
        %v449 = vadd.f32 %v384, %v429
        %v450 = vadd.f32 %v385, %v437
        %v451 = vadd.f32 %v386, %v430
        %v452 = vadd.f32 %v387, %v438
        %v453 = vadd.f32 %v388, %v431
        %v454 = vadd.f32 %v389, %v439
        %v455 = vadd.f32 %v390, %v432
        %v456 = vadd.f32 %v391, %v440
        %457 = vrot.lane.b32.xlu0 %v441, 112
        %v458 = vpop.permute.xlu0 %457
        %459 = vrot.lane.b32.xlu0 %v443, 112
        %v460 = vpop.permute.xlu0 %459
        %461 = vrot.lane.b32.xlu0 %v445, 112
        %v462 = vpop.permute.xlu0 %461
        %463 = vrot.lane.b32.xlu0 %v447, 112
        %v464 = vpop.permute.xlu0 %463
        %465 = vrot.lane.b32.xlu0 %v449, 112
        %v466 = vpop.permute.xlu0 %465
        %467 = vrot.lane.b32.xlu0 %v451, 112
        %v468 = vpop.permute.xlu0 %467
        %469 = vrot.lane.b32.xlu0 %v453, 112
        %v470 = vpop.permute.xlu0 %469
        %471 = vrot.lane.b32.xlu0 %v455, 112
        %v472 = vpop.permute.xlu0 %471
        %473 = vrot.lane.b32.xlu0 %v442, 112
        %v474 = vpop.permute.xlu0 %473
        %475 = vrot.lane.b32.xlu0 %v444, 112
        %v476 = vpop.permute.xlu0 %475
        %477 = vrot.lane.b32.xlu0 %v446, 112
        %v478 = vpop.permute.xlu0 %477
        %479 = vrot.lane.b32.xlu0 %v448, 112
        %v480 = vpop.permute.xlu0 %479
        %481 = vrot.lane.b32.xlu0 %v450, 112
        %v482 = vpop.permute.xlu0 %481
        %483 = vrot.lane.b32.xlu0 %v452, 112
        %v484 = vpop.permute.xlu0 %483
        %485 = vrot.lane.b32.xlu0 %v454, 112
        %v486 = vpop.permute.xlu0 %485
        %487 = vrot.lane.b32.xlu0 %v456, 112
        %v488 = vpop.permute.xlu0 %487
        %vm489 = vcmp.lt.s32.totalorder %v293, 112
        %v490 = vsel %vm489, %v458, %v474
        %v491 = vsel %vm489, %v460, %v476
        %v492 = vsel %vm489, %v462, %v478
        %v493 = vsel %vm489, %v464, %v480
        %v494 = vsel %vm489, %v466, %v482
        %v495 = vsel %vm489, %v468, %v484
        %v496 = vsel %vm489, %v470, %v486
        %v497 = vsel %vm489, %v472, %v488
        %v498 = vsel %vm489, %v474, %v458
        %v499 = vsel %vm489, %v476, %v460
        %v500 = vsel %vm489, %v478, %v462
        %v501 = vsel %vm489, %v480, %v464
        %v502 = vsel %vm489, %v482, %v466
        %v503 = vsel %vm489, %v484, %v468
        %v504 = vsel %vm489, %v486, %v470
        %v505 = vsel %vm489, %v488, %v472
        %v506 = vadd.f32 %v441, %v490
        %v507 = vadd.f32 %v442, %v498
        %v508 = vadd.f32 %v443, %v491
        %v509 = vadd.f32 %v444, %v499
        %v510 = vadd.f32 %v445, %v492
        %v511 = vadd.f32 %v446, %v500
        %v512 = vadd.f32 %v447, %v493
        %v513 = vadd.f32 %v448, %v501
        %v514 = vadd.f32 %v449, %v494
        %v515 = vadd.f32 %v450, %v502
        %v516 = vadd.f32 %v451, %v495
        %v517 = vadd.f32 %v452, %v503
        %v518 = vadd.f32 %v453, %v496
        %v519 = vadd.f32 %v454, %v504
        %v520 = vadd.f32 %v455, %v497
        %v521 = vadd.f32 %v456, %v505
        %522 = vrot.lane.b32.xlu0 %v506, 96
        %v523 = vpop.permute.xlu0 %522
        %524 = vrot.lane.b32.xlu0 %v508, 96
        %v525 = vpop.permute.xlu0 %524
        %526 = vrot.lane.b32.xlu0 %v510, 96
        %v527 = vpop.permute.xlu0 %526
        %528 = vrot.lane.b32.xlu0 %v512, 96
        %v529 = vpop.permute.xlu0 %528
        %530 = vrot.lane.b32.xlu0 %v514, 96
        %v531 = vpop.permute.xlu0 %530
        %532 = vrot.lane.b32.xlu0 %v516, 96
        %v533 = vpop.permute.xlu0 %532
        %534 = vrot.lane.b32.xlu0 %v518, 96
        %v535 = vpop.permute.xlu0 %534
        %536 = vrot.lane.b32.xlu0 %v520, 96
        %v537 = vpop.permute.xlu0 %536
        %538 = vrot.lane.b32.xlu0 %v507, 96
        %v539 = vpop.permute.xlu0 %538
        %540 = vrot.lane.b32.xlu0 %v509, 96
        %v541 = vpop.permute.xlu0 %540
        %542 = vrot.lane.b32.xlu0 %v511, 96
        %v543 = vpop.permute.xlu0 %542
        %544 = vrot.lane.b32.xlu0 %v513, 96
        %v545 = vpop.permute.xlu0 %544
        %546 = vrot.lane.b32.xlu0 %v515, 96
        %v547 = vpop.permute.xlu0 %546
        %548 = vrot.lane.b32.xlu0 %v517, 96
        %v549 = vpop.permute.xlu0 %548
        %550 = vrot.lane.b32.xlu0 %v519, 96
        %v551 = vpop.permute.xlu0 %550
        %552 = vrot.lane.b32.xlu0 %v521, 96
        %v553 = vpop.permute.xlu0 %552
        %vm554 = vcmp.lt.s32.totalorder %v293, 96
        %v555 = vsel %vm554, %v523, %v539
        %v556 = vsel %vm554, %v525, %v541
        %v557 = vsel %vm554, %v527, %v543
        %v558 = vsel %vm554, %v529, %v545
        %v559 = vsel %vm554, %v531, %v547
        %v560 = vsel %vm554, %v533, %v549
        %v561 = vsel %vm554, %v535, %v551
        %v562 = vsel %vm554, %v537, %v553
        %v563 = vsel %vm554, %v539, %v523
        %v564 = vsel %vm554, %v541, %v525
        %v565 = vsel %vm554, %v543, %v527
        %v566 = vsel %vm554, %v545, %v529
        %v567 = vsel %vm554, %v547, %v531
        %v568 = vsel %vm554, %v549, %v533
        %v569 = vsel %vm554, %v551, %v535
        %v570 = vsel %vm554, %v553, %v537
        %v571 = vadd.f32 %v506, %v555
        %v572 = vadd.f32 %v507, %v563
        %v573 = vadd.f32 %v508, %v556
        %v574 = vadd.f32 %v509, %v564
        %v575 = vadd.f32 %v510, %v557
        %v576 = vadd.f32 %v511, %v565
        %v577 = vadd.f32 %v512, %v558
        %v578 = vadd.f32 %v513, %v566
        %v579 = vadd.f32 %v514, %v559
        %v580 = vadd.f32 %v515, %v567
        %v581 = vadd.f32 %v516, %v560
        %v582 = vadd.f32 %v517, %v568
        %v583 = vadd.f32 %v518, %v561
        %v584 = vadd.f32 %v519, %v569
        %v585 = vadd.f32 %v520, %v562
        %v586 = vadd.f32 %v521, %v570
        %587 = vrot.lane.b32.xlu0 %v571, 64
        %v588 = vpop.permute.xlu0 %587
        %589 = vrot.lane.b32.xlu0 %v573, 64
        %v590 = vpop.permute.xlu0 %589
        %591 = vrot.lane.b32.xlu0 %v575, 64
        %v592 = vpop.permute.xlu0 %591
        %593 = vrot.lane.b32.xlu0 %v577, 64
        %v594 = vpop.permute.xlu0 %593
        %595 = vrot.lane.b32.xlu0 %v579, 64
        %v596 = vpop.permute.xlu0 %595
        %597 = vrot.lane.b32.xlu0 %v581, 64
        %v598 = vpop.permute.xlu0 %597
        %599 = vrot.lane.b32.xlu0 %v583, 64
        %v600 = vpop.permute.xlu0 %599
        %601 = vrot.lane.b32.xlu0 %v585, 64
        %v602 = vpop.permute.xlu0 %601
        %603 = vrot.lane.b32.xlu0 %v572, 64
        %v604 = vpop.permute.xlu0 %603
        %605 = vrot.lane.b32.xlu0 %v574, 64
        %v606 = vpop.permute.xlu0 %605
        %607 = vrot.lane.b32.xlu0 %v576, 64
        %v608 = vpop.permute.xlu0 %607
        %609 = vrot.lane.b32.xlu0 %v578, 64
        %v610 = vpop.permute.xlu0 %609
        %611 = vrot.lane.b32.xlu0 %v580, 64
        %v612 = vpop.permute.xlu0 %611
        %613 = vrot.lane.b32.xlu0 %v582, 64
        %v614 = vpop.permute.xlu0 %613
        %615 = vrot.lane.b32.xlu0 %v584, 64
        %v616 = vpop.permute.xlu0 %615
        %617 = vrot.lane.b32.xlu0 %v586, 64
        %v618 = vpop.permute.xlu0 %617
        %vm619 = vcmp.lt.s32.totalorder %v293, 64
        %v620 = vsel %vm619, %v588, %v604
        %v621 = vsel %vm619, %v590, %v606
        %v622 = vsel %vm619, %v592, %v608
        %v623 = vsel %vm619, %v594, %v610
        %v624 = vsel %vm619, %v596, %v612
        %v625 = vsel %vm619, %v598, %v614
        %v626 = vsel %vm619, %v600, %v616
        %v627 = vsel %vm619, %v602, %v618
        %v628 = vsel %vm619, %v604, %v588
        %v629 = vsel %vm619, %v606, %v590
        %v630 = vsel %vm619, %v608, %v592
        %v631 = vsel %vm619, %v610, %v594
        %v632 = vsel %vm619, %v612, %v596
        %v633 = vsel %vm619, %v614, %v598
        %v634 = vsel %vm619, %v616, %v600
        %v635 = vsel %vm619, %v618, %v602
        %v636 = vadd.f32 %v571, %v620
        %v637 = vadd.f32 %v572, %v628
        %v638 = vadd.f32 %v573, %v621
        %v639 = vadd.f32 %v574, %v629
        %v640 = vadd.f32 %v575, %v622
        %v641 = vadd.f32 %v576, %v630
        %v642 = vadd.f32 %v577, %v623
        %v643 = vadd.f32 %v578, %v631
        %v644 = vadd.f32 %v579, %v624
        %v645 = vadd.f32 %v580, %v632
        %v646 = vadd.f32 %v581, %v625
        %v647 = vadd.f32 %v582, %v633
        %v648 = vadd.f32 %v583, %v626
        %v649 = vadd.f32 %v584, %v634
        %v650 = vadd.f32 %v585, %v627
        %v651 = vadd.f32 %v586, %v635
        %v652 = vld [vmem:[%s1] sm:$0xff]
        %v653 = vld [vmem:[%s1 + $0x8] sm:$0xff]
        %v654 = vld [vmem:[%s1 + $0x10] sm:$0xff]
        %v655 = vld [vmem:[%s1 + $0x18] sm:$0xff]
        %v656 = vld [vmem:[%s1 + $0x20] sm:$0xff]
        %v657 = vld [vmem:[%s1 + $0x28] sm:$0xff]
        %v658 = vld [vmem:[%s1 + $0x30] sm:$0xff]
        %v659 = vld [vmem:[%s1 + $0x38] sm:$0xff]
        %v660 = vld [vmem:[%s2] sm:$0xff]
        %v661 = vld [vmem:[%s2 + $0x8] sm:$0xff]
        %v662 = vld [vmem:[%s2 + $0x10] sm:$0xff]
        %v663 = vld [vmem:[%s2 + $0x18] sm:$0xff]
        %v664 = vld [vmem:[%s2 + $0x20] sm:$0xff]
        %v665 = vld [vmem:[%s2 + $0x28] sm:$0xff]
        %v666 = vld [vmem:[%s2 + $0x30] sm:$0xff]
        %v667 = vld [vmem:[%s2 + $0x38] sm:$0xff]
        %669 = vset.pattern.permute.xlu0 0
        %670 = vperm.xlu0 %669, %v660
        %v671 = vpop.permute.xlu0 %670
        %674 = vset.pattern.permute.xlu0 0
        %675 = vperm.xlu0 %674, %v661
        %v676 = vpop.permute.xlu0 %675
        %679 = vset.pattern.permute.xlu0 0
        %680 = vperm.xlu0 %679, %v662
        %v681 = vpop.permute.xlu0 %680
        %684 = vset.pattern.permute.xlu0 0
        %685 = vperm.xlu0 %684, %v663
        %v686 = vpop.permute.xlu0 %685
        %689 = vset.pattern.permute.xlu0 0
        %690 = vperm.xlu0 %689, %v664
        %v691 = vpop.permute.xlu0 %690
        %694 = vset.pattern.permute.xlu0 0
        %695 = vperm.xlu0 %694, %v665
        %v696 = vpop.permute.xlu0 %695
        %699 = vset.pattern.permute.xlu0 0
        %700 = vperm.xlu0 %699, %v666
        %v701 = vpop.permute.xlu0 %700
        %704 = vset.pattern.permute.xlu0 0
        %705 = vperm.xlu0 %704, %v667
        %v706 = vpop.permute.xlu0 %705
        %vm708 = vcmask 523264
        %v710 = vsel %vm708, %v652, 0
        %v713 = vsel %vm708, %v653, 0
        %v716 = vsel %vm708, %v654, 0
        %v719 = vsel %vm708, %v655, 0
        %v722 = vsel %vm708, %v656, 0
        %v725 = vsel %vm708, %v657, 0
        %v728 = vsel %vm708, %v658, 0
        %v731 = vsel %vm708, %v659, 0
        %733 = vmatprep.subr.mxu0 %v637
        %734 = vmatpush1.msra.mxu0 %v636
        %735 = vmatprep.subr.mxu0 %v639
        %736 = vmatpush1.msra.mxu0 %v638
        %737 = vmatprep.subr.mxu0 %v641
        %738 = vmatpush1.msra.mxu0 %v640
        %739 = vmatprep.subr.mxu0 %v643
        %740 = vmatpush1.msra.mxu0 %v642
        %741 = vmatprep.subr.mxu0 %v645
        %742 = vmatpush1.msra.mxu0 %v644
        %743 = vmatprep.subr.mxu0 %v647
        %744 = vmatpush1.msra.mxu0 %v646
        %745 = vmatprep.subr.mxu0 %v649
        %746 = vmatpush1.msra.mxu0 %v648
        %747 = vmatprep.subr.mxu0 %v651
        %748 = vmatpush1.msra.mxu0 %v650
        %749 = vmatprep.subr.mxu0 0.0
        %750 = vmatpush1.msra.mxu0 0.0
        %751 = vmatprep.subr.mxu0 0.0
        %752 = vmatpush1.msra.mxu0 0.0
        %753 = vmatprep.subr.mxu0 0.0
        %754 = vmatpush1.msra.mxu0 0.0
        %755 = vmatprep.subr.mxu0 0.0
        %756 = vmatpush1.msra.mxu0 0.0
        %757 = vmatprep.subr.mxu0 0.0
        %758 = vmatpush1.msra.mxu0 0.0
        %759 = vmatprep.subr.mxu0 0.0
        %760 = vmatpush1.msra.mxu0 0.0
        %761 = vmatprep.subr.mxu0 0.0
        %762 = vmatpush1.msra.mxu0 0.0
        %763 = vmatprep.subr.mxu0 0.0
        %764 = vmatpush1.msra.mxu0 0.0
        %765 = vmatprep.subr.mxu0 0.0
        %766 = vmatpush1.msra.mxu0 0.0
        %767 = vmatprep.subr.mxu0 0.0
        %768 = vmatpush1.msra.mxu0 0.0
        %769 = vmatprep.subr.mxu0 0.0
        %770 = vmatpush1.msra.mxu0 0.0
        %771 = vmatprep.subr.mxu0 0.0
        %772 = vmatpush1.msra.mxu0 0.0
        %773 = vmatprep.subr.mxu0 0.0
        %774 = vmatpush1.msra.mxu0 0.0
        %775 = vmatprep.subr.mxu0 0.0
        %776 = vmatpush1.msra.mxu0 0.0
        %777 = vmatprep.subr.mxu0 0.0
        %778 = vmatpush1.msra.mxu0 0.0
        %779 = vmatprep.subr.mxu0 0.0
        %780 = vmatpush1.msra.mxu0 0.0
        %781 = vmatprep.subr.mxu0 0.0
        %782 = vmatpush1.msra.mxu0 0.0
        %783 = vmatprep.subr.mxu0 0.0
        %784 = vmatpush1.msra.mxu0 0.0
        %785 = vmatprep.subr.mxu0 0.0
        %786 = vmatpush1.msra.mxu0 0.0
        %787 = vmatprep.subr.mxu0 0.0
        %788 = vmatpush1.msra.mxu0 0.0
        %789 = vmatprep.subr.mxu0 0.0
        %790 = vmatpush1.msra.mxu0 0.0
        %791 = vmatprep.subr.mxu0 0.0
        %792 = vmatpush1.msra.mxu0 0.0
        %793 = vmatprep.subr.mxu0 0.0
        %794 = vmatpush1.msra.mxu0 0.0
        %795 = vmatprep.subr.mxu0 0.0
        %796 = vmatpush1.msra.mxu0 0.0
        %797 = vmatprep.mubr.f32.mxu0 0.0
        %798 = vmatmul.mubr.f32.gmra.mrb[0].mxu0 %v710
        %v799 = vpop.f32.mrb[0].mxu0
        %v800 = vadd.f32 %v671, %v799
        %v801 = vpop.f32.mrb[0].mxu0
        %v802 = vadd.f32 %v671, %v801
        %803 = vmatprep.mubr.f32.mxu0 0.0
        %804 = vmatmul.mubr.f32.gmra.mrb[0].mxu0 %v713
        %v805 = vpop.f32.mrb[0].mxu0
        %v806 = vadd.f32 %v676, %v805
        %v807 = vpop.f32.mrb[0].mxu0
        %v808 = vadd.f32 %v676, %v807
        %809 = vmatprep.mubr.f32.mxu0 0.0
        %810 = vmatmul.mubr.f32.gmra.mrb[0].mxu0 %v716
        %v811 = vpop.f32.mrb[0].mxu0
        %v812 = vadd.f32 %v681, %v811
        %v813 = vpop.f32.mrb[0].mxu0
        %v814 = vadd.f32 %v681, %v813
        %815 = vmatprep.mubr.f32.mxu0 0.0
        %816 = vmatmul.mubr.f32.gmra.mrb[0].mxu0 %v719
        %v817 = vpop.f32.mrb[0].mxu0
        %v818 = vadd.f32 %v686, %v817
        %v819 = vpop.f32.mrb[0].mxu0
        %v820 = vadd.f32 %v686, %v819
        %821 = vmatprep.mubr.f32.mxu0 0.0
        %822 = vmatmul.mubr.f32.gmra.mrb[0].mxu0 %v722
        %v823 = vpop.f32.mrb[0].mxu0
        %v824 = vadd.f32 %v691, %v823
        %v825 = vpop.f32.mrb[0].mxu0
        %v826 = vadd.f32 %v691, %v825
        %827 = vmatprep.mubr.f32.mxu0 0.0
        %828 = vmatmul.mubr.f32.gmra.mrb[0].mxu0 %v725
        %v829 = vpop.f32.mrb[0].mxu0
        %v830 = vadd.f32 %v696, %v829
        %v831 = vpop.f32.mrb[0].mxu0
        %v832 = vadd.f32 %v696, %v831
        %833 = vmatprep.mubr.f32.mxu0 0.0
        %834 = vmatmul.mubr.f32.gmra.mrb[0].mxu0 %v728
        %v835 = vpop.f32.mrb[0].mxu0
        %v836 = vadd.f32 %v701, %v835
        %v837 = vpop.f32.mrb[0].mxu0
        %v838 = vadd.f32 %v701, %v837
        %839 = vmatprep.mubr.f32.mxu0 0.0
        %840 = vmatmul.mubr.f32.gmra.mrb[0].mxu0 %v731
        %v841 = vpop.f32.mrb[0].mxu0
        %v842 = vadd.f32 %v706, %v841
        %v843 = vpop.f32.mrb[0].mxu0
        %v844 = vadd.f32 %v706, %v843
        %845 = vdwg.mxu0
        %v846 = vmax.f32 %v800, 0.0
        %v847 = vmax.f32 %v802, 0.0
        %v848 = vmax.f32 %v806, 0.0
        %v849 = vmax.f32 %v808, 0.0
        %v850 = vmax.f32 %v812, 0.0
        %v851 = vmax.f32 %v814, 0.0
        %v852 = vmax.f32 %v818, 0.0
        %v853 = vmax.f32 %v820, 0.0
        %v854 = vmax.f32 %v824, 0.0
        %v855 = vmax.f32 %v826, 0.0
        %v856 = vmax.f32 %v830, 0.0
        %v857 = vmax.f32 %v832, 0.0
        %v858 = vmax.f32 %v836, 0.0
        %v859 = vmax.f32 %v838, 0.0
        %v860 = vmax.f32 %v842, 0.0
        %v861 = vmax.f32 %v844, 0.0
        %v862 = vld [vmem:[%s3] sm:$0x1]
        %s863 = sld [smem:[#allocation2]]
        %v864 = vstv %s863
        %v866 = vsel %vm708, %v862, 0
        %868 = vmatprep.subr.mxu0 %v847
        %869 = vmatpush1.msra.mxu0 %v846
        %870 = vmatprep.subr.mxu0 %v849
        %871 = vmatpush1.msra.mxu0 %v848
        %872 = vmatprep.subr.mxu0 %v851
        %873 = vmatpush1.msra.mxu0 %v850
        %874 = vmatprep.subr.mxu0 %v853
        %875 = vmatpush1.msra.mxu0 %v852
        %876 = vmatprep.subr.mxu0 %v855
        %877 = vmatpush1.msra.mxu0 %v854
        %878 = vmatprep.subr.mxu0 %v857
        %879 = vmatpush1.msra.mxu0 %v856
        %880 = vmatprep.subr.mxu0 %v859
        %881 = vmatpush1.msra.mxu0 %v858
        %882 = vmatprep.subr.mxu0 %v861
        %883 = vmatpush1.msra.mxu0 %v860
        %884 = vmatprep.subr.mxu0 0.0
        %885 = vmatpush1.msra.mxu0 0.0
        %886 = vmatprep.subr.mxu0 0.0
        %887 = vmatpush1.msra.mxu0 0.0
        %888 = vmatprep.subr.mxu0 0.0
        %889 = vmatpush1.msra.mxu0 0.0
        %890 = vmatprep.subr.mxu0 0.0
        %891 = vmatpush1.msra.mxu0 0.0
        %892 = vmatprep.subr.mxu0 0.0
        %893 = vmatpush1.msra.mxu0 0.0
        %894 = vmatprep.subr.mxu0 0.0
        %895 = vmatpush1.msra.mxu0 0.0
        %896 = vmatprep.subr.mxu0 0.0
        %897 = vmatpush1.msra.mxu0 0.0
        %898 = vmatprep.subr.mxu0 0.0
        %899 = vmatpush1.msra.mxu0 0.0
        %900 = vmatprep.subr.mxu0 0.0
        %901 = vmatpush1.msra.mxu0 0.0
        %902 = vmatprep.subr.mxu0 0.0
        %903 = vmatpush1.msra.mxu0 0.0
        %904 = vmatprep.subr.mxu0 0.0
        %905 = vmatpush1.msra.mxu0 0.0
        %906 = vmatprep.subr.mxu0 0.0
        %907 = vmatpush1.msra.mxu0 0.0
        %908 = vmatprep.subr.mxu0 0.0
        %909 = vmatpush1.msra.mxu0 0.0
        %910 = vmatprep.subr.mxu0 0.0
        %911 = vmatpush1.msra.mxu0 0.0
        %912 = vmatprep.subr.mxu0 0.0
        %913 = vmatpush1.msra.mxu0 0.0
        %914 = vmatprep.subr.mxu0 0.0
        %915 = vmatpush1.msra.mxu0 0.0
        %916 = vmatprep.subr.mxu0 0.0
        %917 = vmatpush1.msra.mxu0 0.0
        %918 = vmatprep.subr.mxu0 0.0
        %919 = vmatpush1.msra.mxu0 0.0
        %920 = vmatprep.subr.mxu0 0.0
        %921 = vmatpush1.msra.mxu0 0.0
        %922 = vmatprep.subr.mxu0 0.0
        %923 = vmatpush1.msra.mxu0 0.0
        %924 = vmatprep.subr.mxu0 0.0
        %925 = vmatpush1.msra.mxu0 0.0
        %926 = vmatprep.subr.mxu0 0.0
        %927 = vmatpush1.msra.mxu0 0.0
        %928 = vmatprep.subr.mxu0 0.0
        %929 = vmatpush1.msra.mxu0 0.0
        %930 = vmatprep.subr.mxu0 0.0
        %931 = vmatpush1.msra.mxu0 0.0
        %932 = vmatprep.mubr.f32.mxu0 0.0
        %933 = vmatmul.mubr.f32.gmra.mrb[0].mxu0 %v866
        %v934 = vpop.f32.mrb[0].mxu0
        %v935 = vadd.f32 %v864, %v934
        %v936 = vpop.f32.mrb[0].mxu0
        %v937 = vadd.f32 %v864, %v936
        %938 = vdwg.mxu0
        %v939 = vmax.f32 %v935, 0.0
        %v940 = vmax.f32 %v937, 0.0
        %v943 = vcombine.low %v939, %v940
        %v945 = vunpack.c.l.s4 1966171168
        %v946 = vunpack.c.0.s8 %v945
        %v947 = vlaneseq
        %v948 = vshrl.u32 %v947, 7
        %v949 = vsub.s32 %v946, %v948
        %v950 = vrot.slane %v943, %v949
        %v952 = vunpack.c.l.s4 1966171168
        %v953 = vunpack.c.0.s8 %v952
        %v954 = vlaneseq
        %v955 = vshrl.u32 %v954, 7
        %v956 = vsub.s32 %v953, %v955
        %v957 = vrot.slane %v950, %v956
        %v959 = vlaneseq
        %vm960 = vcmp.ge.s32.totalorder %v959, 0
        %vm961 = vcmp.lt.s32.totalorder %v959, 256
        %vm962 = vmand %vm960, %vm961
        %963 = vst.msk [vmem:[%s243] sm:$0x3] %vm962, %v957
        %s964 = sand.u32 %s141, 1
        %s965 = scalar_lea.sflag [#allocation5], %s964
        %s966 = sand.u32 %s141, 1
        %s967 = smul.addr %s966, 2
        %s968 = scalar_lea.vmem [#allocation6], %s967
        // Predicated region
        $region45: #{tpu_custom_call.1} parent=39 // pred_check
          %p969 = pneg %p151
        $region46: #{tpu_custom_call.1} parent=39 // pred_check_branch
          %971 = sbr.rel (%p969) target = $region48
        $region47: #{tpu_custom_call.1} parent=39 // pred_region
          %s973 = ssub.s32 32, 32
          %974 = vsyncadd %s965, %s973
          %s975 = smul.addr %s23, 2
          %s976 = smul.addr %s975, 16
          %s977 = scalar_lea.hbm %s5, %s976
          %s979 = sshll.u32 %s968, 4
          %s980 = int_to_ptr.vmem [resolvable:$true] %s979
          %982 = dma.vmem_to_hbm [thread:$0]  %s980, 32, %s977, %s965
        $region48: #{tpu_custom_call.1} parent=39 // pred_fallthru
          _
      $region40: #{tpu_custom_call.1} parent=5 // pred_fallthru
        _
      %p983 = scmp.le.s32.totalorder 2, %s18
      // Predicated region
      $region49: #{tpu_custom_call.1} parent=5 // pred_check
        %p984 = pneg %p983
      $region50: #{tpu_custom_call.1} parent=5 // pred_check_branch
        %986 = sbr.rel (%p984) target = $region52
      $region51: #{tpu_custom_call.1} parent=5 // pred_region
        %s987 = ssub.s32 %s18, 2
        // Predicated region
        $region53: #{tpu_custom_call.1} parent=51 // pred_check
          %p988 = pneg %p157
        $region54: #{tpu_custom_call.1} parent=51 // pred_check_branch
          %990 = sbr.rel (%p988) target = $region56
        $region55: #{tpu_custom_call.1} parent=51 // pred_region
          %s991 = sand.u32 %s142, 1
          %s992 = scalar_lea.sflag [#allocation5], %s991
          %s993 = sand.u32 %s142, 1
          %s994 = smul.addr %s993, 2
          %s995 = scalar_lea.vmem [#allocation6], %s994
          %996 = dma.done %s992, 32
        $region56: #{tpu_custom_call.1} parent=51 // pred_fallthru
          _
      $region52: #{tpu_custom_call.1} parent=5 // pred_fallthru
        _
    $region6: #{tpu_custom_call.1} parent=1 // loop_footer
      %s22 = sadd.s32 1, %s18
    $region7: #{tpu_custom_call.1} parent=1 // loop_footer_branch
      %17 = sbr.rel target = $region3
    $region8: #{tpu_custom_call.1} parent=1 // loop_exit
      _
    %997 = vsyncpa [#allocation4], 1
    %s998 = scalar_lea.sflag [#allocation4], 1
    %999 = vsyncpa %s998, 1
    %1000 = vsyncpa [#allocation5], 1
    %s1001 = scalar_lea.sflag [#allocation5], 1
    %1002 = vsyncpa %s1001, 1

</llo_original>
